<compile_context>
chip_gen: v5e
topology: v5e:2x2
jax: 0.10.0
libtpu: 0.0.40
codegen_flags: <defaults>
</compile_context>

<pallas_src>
import functools

import jax
import jax.numpy as jnp
from jax import lax
from jax.experimental import pallas as pl
from jax.experimental.pallas import tpu as pltpu


def _round_up(n, m):
    return ((n + m - 1) // m) * m


def lconv_kernel(xl_ref, xc_ref, xr_ref, w1a_ref, b1a_ref, w1b_ref, b1b_ref,
                 wk_ref, lb_ref, w2_ref, b2_ref, o_ref, xext_ref,
                 *, kernel_size, padding, halo, tile_t, seq_len):
    # ---- assemble halo-extended x tile in VMEM scratch: [left | tile | right] ----
    xext_ref[0:halo, :] = xl_ref[0]
    xext_ref[halo:halo + tile_t, :] = xc_ref[0]
    xext_ref[halo + tile_t:tile_t + 2 * halo, :] = xr_ref[0]
    xe = xext_ref[...]                                   # (tile_t + 2*halo, Cp), bf16

    # ---- pointwise_conv1 split into linear/gate halves (MXU, bf16 in / f32 acc) ----
    lin = jnp.dot(xe, w1a_ref[...], preferred_element_type=jnp.float32) + b1a_ref[...]
    gate = jnp.dot(xe, w1b_ref[...], preferred_element_type=jnp.float32) + b1b_ref[...]
    g = lin * jax.nn.sigmoid(gate)                       # GLU, f32

    # ---- zero rows outside the true sequence with one (rows, 1) mask: this
    #      realizes the conv 'same' zero padding and the T-padding of the last
    #      tile (stale / recomputed halo rows are also killed here). ----
    j = pl.program_id(1)
    row = j * tile_t - halo + lax.broadcasted_iota(jnp.int32, (g.shape[0], 1), 0)
    g = jnp.where((row >= 0) & (row < seq_len), g, 0.0)

    # ---- lightweight depthwise conv along time: pad-and-slice, K fused mul-adds ----
    wk = wk_ref[...]                                     # (K, Cp) softmaxed taps / channel
    base = halo - padding
    acc = jnp.zeros((tile_t, g.shape[1]), jnp.float32)
    for k in range(kernel_size):                         # static, small K
        acc = acc + g[base + k:base + k + tile_t, :] * wk[k]
    z = acc + lb_ref[...]                                # lconv bias

    # ---- pointwise_conv2 (bf16 operands, f32 accumulate) ----
    y = jnp.dot(z.astype(w2_ref.dtype), w2_ref[...],
                preferred_element_type=jnp.float32) + b2_ref[...]
    o_ref[0] = y.astype(o_ref.dtype)
    # TODO(synk): dropout on the softmaxed lconv weights is skipped (dropout_rate=0.0).


def lconv_module(x, w1t, b1, lconv_w, lconv_b, w2t, b2, *,
                 wshare, kernel_size, tile_t=256):
    B, T, C = x.shape
    assert (kernel_size - 1) % 2 == 0, "lightweight conv requires odd kernel_size"
    assert C % wshare == 0
    padding = (kernel_size - 1) // 2
    out_dtype = x.dtype

    # ---- tiling / layout: lane-dense channels, sublane-aligned time tiles + halo ----
    Cp = max(128, _round_up(C, 128))
    halo = max(8, _round_up(padding, 8))     # halo block (>= conv padding, 8-aligned)
    tT = min(tile_t, _round_up(T, 8))
    tT = _round_up(tT, halo)                 # halo block size must divide the tile
    T_pad = _round_up(T, tT)
    nT = T_pad // tT
    tile_ext = tT + 2 * halo
    hpb = tT // halo                         # halo blocks per tile

    # ---- parameter prep (glue): softmax taps, expand shared heads per channel ----
    sw = jax.nn.softmax(lconv_w[:, 0, :], axis=-1)        # (wshare, K)
    wk = sw[jnp.arange(C) % wshare].T                      # (K, C): channel c -> head c % wshare

    def pad2(a, rows, cols, dtype=None):
        a = jnp.pad(a, ((0, rows - a.shape[0]), (0, cols - a.shape[1])))
        return a if dtype is None else a.astype(dtype)

    bf16 = jnp.bfloat16
    w1a = pad2(w1t[:, :C], Cp, Cp, bf16)     # linear half of pointwise_conv1 (C, C)
    w1b = pad2(w1t[:, C:], Cp, Cp, bf16)     # gate half
    b1a = pad2(b1[:C][None, :], 1, Cp)       # biases stay f32
    b1b = pad2(b1[C:][None, :], 1, Cp)
    wkp = pad2(wk, kernel_size, Cp)
    lbp = pad2(lconv_b[None, :], 1, Cp)
    w2p = pad2(w2t, Cp, Cp, bf16)
    b2p = pad2(b2[None, :], 1, Cp)

    # x: pad time to T_pad + halo (extra rows = right halo of last tile), pad
    # channels to Cp, cast to bf16 (MXU operand + halved HBM->VMEM traffic).
    xp = jnp.pad(x, ((0, 0), (0, T_pad + halo - T), (0, Cp - C))).astype(bf16)

    kern = functools.partial(lconv_kernel, kernel_size=kernel_size,
                             padding=padding, halo=halo, tile_t=tT, seq_len=T)

    out = pl.pallas_call(
        kern,
        out_shape=jax.ShapeDtypeStruct((B, T_pad, Cp), out_dtype),
        grid_spec=pltpu.PrefetchScalarGridSpec(
            num_scalar_prefetch=0,
            grid=(B, nT),
            in_specs=[
                # left halo rows [j*tT - halo, j*tT), clamped at sequence start
                pl.BlockSpec((1, halo, Cp),
                             lambda b, j: (b, jnp.maximum(j * hpb - 1, 0), 0)),
                # main tile rows [j*tT, (j+1)*tT)
                pl.BlockSpec((1, tT, Cp), lambda b, j: (b, j, 0)),
                # right halo rows [(j+1)*tT, (j+1)*tT + halo)
                pl.BlockSpec((1, halo, Cp), lambda b, j: (b, (j + 1) * hpb, 0)),
                pl.BlockSpec((Cp, Cp), lambda b, j: (0, 0)),            # W1a^T
                pl.BlockSpec((1, Cp), lambda b, j: (0, 0)),             # b1a
                pl.BlockSpec((Cp, Cp), lambda b, j: (0, 0)),            # W1b^T
                pl.BlockSpec((1, Cp), lambda b, j: (0, 0)),             # b1b
                pl.BlockSpec((kernel_size, Cp), lambda b, j: (0, 0)),   # lconv taps
                pl.BlockSpec((1, Cp), lambda b, j: (0, 0)),             # lconv bias
                pl.BlockSpec((Cp, Cp), lambda b, j: (0, 0)),            # W2^T
                pl.BlockSpec((1, Cp), lambda b, j: (0, 0)),             # b2
            ],
            out_specs=pl.BlockSpec((1, tT, Cp), lambda b, j: (b, j, 0)),
            scratch_shapes=[pltpu.VMEM((tile_ext, Cp), bf16)],
        ),
        compiler_params=pltpu.CompilerParams(
            dimension_semantics=("parallel", "parallel"),
            vmem_limit_bytes=48 * 1024 * 1024,   # headroom, still < v7x 64 MiB physical
        ),
    )(xp, xp, xp, w1a, b1a, w1b, b1b, wkp, lbp, w2p, b2p)

    return out[:, :T, :C]


def reference(x, w1t, b1, lconv_w, lconv_b, w2t, b2, *, wshare, kernel_size):
    """Pure-JAX reference mirroring the PyTorch forward (same bf16 MXU operands)."""
    B, T, C = x.shape
    K = kernel_size
    padding = (K - 1) // 2
    bf16 = jnp.bfloat16
    y1 = jnp.dot(x.astype(bf16), w1t.astype(bf16),
                 preferred_element_type=jnp.float32) + b1
    g = y1[..., :C] * jax.nn.sigmoid(y1[..., C:])
    sw = jax.nn.softmax(lconv_w[:, 0, :], axis=-1)
    wk = sw[jnp.arange(C) % wshare].T                     # (K, C)
    gp = jnp.pad(g, ((0, 0), (padding, padding), (0, 0)))
    z = sum(gp[:, k:k + T, :] * wk[k] for k in range(K)) + lconv_b
    return jnp.dot(z.astype(bf16), w2t.astype(bf16),
                   preferred_element_type=jnp.float32) + b2


if __name__ == "__main__":
    B, T, C = 2, 16, 32
    wshare, kernel_size = 4, 3

    key = jax.random.PRNGKey(0)
    ks = jax.random.split(key, 7)
    x = jax.random.normal(ks[0], (B, T, C), jnp.float32)
    lconv_w = jax.random.uniform(ks[1], (wshare, 1, kernel_size), jnp.float32)  # nn.Parameter(wshare,1,K)
    lconv_b = jax.random.normal(ks[2], (C,), jnp.float32) * 0.1                 # self.bias (channels,)
    w1t = jax.random.normal(ks[3], (C, 2 * C), jnp.float32) * 0.1               # pointwise_conv1 weight^T
    b1 = jax.random.normal(ks[4], (2 * C,), jnp.float32) * 0.1
    w2t = jax.random.normal(ks[5], (C, C), jnp.float32) * 0.1                   # pointwise_conv2 weight^T
    b2 = jax.random.normal(ks[6], (C,), jnp.float32) * 0.1

    out = lconv_module(x, w1t, b1, lconv_w, lconv_b, w2t, b2,
                       wshare=wshare, kernel_size=kernel_size)
    out = jax.block_until_ready(out)

    ref = reference(x, w1t, b1, lconv_w, lconv_b, w2t, b2,
                    wshare=wshare, kernel_size=kernel_size)
    assert out.shape == (B, T, C)
    err = float(jnp.max(jnp.abs(out - ref)))
    assert jnp.allclose(out, ref, atol=5e-3, rtol=5e-3), f"max abs err {err}"
    print("KERNEL_OK")
</pallas_src>

<mosaic_0001>
module attributes {stable_mosaic.version = 11 : i64} {
  func.func @lconv_kernel(%arg0: i32, %arg1: i32, %arg2: memref<1x8x128xbf16, #tpu.memory_space<vmem>>, %arg3: memref<1x16x128xbf16, #tpu.memory_space<vmem>>, %arg4: memref<1x8x128xbf16, #tpu.memory_space<vmem>>, %arg5: memref<128x128xbf16, #tpu.memory_space<vmem>>, %arg6: memref<1x128xf32, #tpu.memory_space<vmem>>, %arg7: memref<128x128xbf16, #tpu.memory_space<vmem>>, %arg8: memref<1x128xf32, #tpu.memory_space<vmem>>, %arg9: memref<3x128xf32, #tpu.memory_space<vmem>>, %arg10: memref<1x128xf32, #tpu.memory_space<vmem>>, %arg11: memref<128x128xbf16, #tpu.memory_space<vmem>>, %arg12: memref<1x128xf32, #tpu.memory_space<vmem>>, %arg13: memref<1x16x128xf32, #tpu.memory_space<vmem>>, %arg14: memref<32x128xbf16, #tpu.memory_space<vmem>>) attributes {dimension_semantics = [#tpu.dimension_semantics<parallel>, #tpu.dimension_semantics<parallel>], iteration_bounds = array<i64: 2, 1>, scalar_prefetch = 0 : i64, scratch_operands = 1 : i64, tpu.core_type = #tpu.core_type<tc>, window_params = [{transform_indices = @transform_0, window_bounds = array<i64: 1, 8, 128>}, {transform_indices = @transform_1, window_bounds = array<i64: 1, 16, 128>}, {transform_indices = @transform_2, window_bounds = array<i64: 1, 8, 128>}, {pipeline_mode = #tpu.pipeline_mode<synchronous>, transform_indices = @transform_3, window_bounds = array<i64: 128, 128>}, {pipeline_mode = #tpu.pipeline_mode<synchronous>, transform_indices = @transform_4, window_bounds = array<i64: 1, 128>}, {pipeline_mode = #tpu.pipeline_mode<synchronous>, transform_indices = @transform_5, window_bounds = array<i64: 128, 128>}, {pipeline_mode = #tpu.pipeline_mode<synchronous>, transform_indices = @transform_6, window_bounds = array<i64: 1, 128>}, {pipeline_mode = #tpu.pipeline_mode<synchronous>, transform_indices = @transform_7, window_bounds = array<i64: 3, 128>}, {pipeline_mode = #tpu.pipeline_mode<synchronous>, transform_indices = @transform_8, window_bounds = array<i64: 1, 128>}, {pipeline_mode = #tpu.pipeline_mode<synchronous>, transform_indices = @transform_9, window_bounds = array<i64: 128, 128>}, {pipeline_mode = #tpu.pipeline_mode<synchronous>, transform_indices = @transform_10, window_bounds = array<i64: 1, 128>}, {transform_indices = @transform_11, window_bounds = array<i64: 1, 16, 128>}]} {
    %c0 = arith.constant 0 : index
    %c0_0 = arith.constant 0 : index
    %c0_1 = arith.constant 0 : index
    %0 = vector.load %arg2[%c0, %c0_0, %c0_1] : memref<1x8x128xbf16, #tpu.memory_space<vmem>>, vector<1x8x128xbf16>
    %1 = vector.shape_cast %0 : vector<1x8x128xbf16> to vector<8x128xbf16>
    %c0_2 = arith.constant 0 : index
    %c0_3 = arith.constant 0 : index
    %2 = vector.load %arg14[%c0_2, %c0_3] : memref<32x128xbf16, #tpu.memory_space<vmem>>, vector<8x128xbf16>
    tpu.vector_store %arg14[%c0_2, %c0_3], %1 {strides = array<i32>} : memref<32x128xbf16, #tpu.memory_space<vmem>>, vector<8x128xbf16>,
    %c0_4 = arith.constant 0 : index
    %c0_5 = arith.constant 0 : index
    %c0_6 = arith.constant 0 : index
    %3 = vector.load %arg3[%c0_4, %c0_5, %c0_6] : memref<1x16x128xbf16, #tpu.memory_space<vmem>>, vector<1x16x128xbf16>
    %4 = vector.shape_cast %3 : vector<1x16x128xbf16> to vector<16x128xbf16>
    %c8 = arith.constant 8 : index
    %c0_7 = arith.constant 0 : index
    %5 = vector.load %arg14[%c8, %c0_7] : memref<32x128xbf16, #tpu.memory_space<vmem>>, vector<16x128xbf16>
    tpu.vector_store %arg14[%c8, %c0_7], %4 {strides = array<i32>} : memref<32x128xbf16, #tpu.memory_space<vmem>>, vector<16x128xbf16>,
    %c0_8 = arith.constant 0 : index
    %c0_9 = arith.constant 0 : index
    %c0_10 = arith.constant 0 : index
    %6 = vector.load %arg4[%c0_8, %c0_9, %c0_10] : memref<1x8x128xbf16, #tpu.memory_space<vmem>>, vector<1x8x128xbf16>
    %7 = vector.shape_cast %6 : vector<1x8x128xbf16> to vector<8x128xbf16>
    %c24 = arith.constant 24 : index
    %c0_11 = arith.constant 0 : index
    %8 = vector.load %arg14[%c24, %c0_11] : memref<32x128xbf16, #tpu.memory_space<vmem>>, vector<8x128xbf16>
    tpu.vector_store %arg14[%c24, %c0_11], %7 {strides = array<i32>} : memref<32x128xbf16, #tpu.memory_space<vmem>>, vector<8x128xbf16>,
    %c0_12 = arith.constant 0 : index
    %c0_13 = arith.constant 0 : index
    %9 = vector.load %arg14[%c0_12, %c0_13] : memref<32x128xbf16, #tpu.memory_space<vmem>>, vector<32x128xbf16>
    %c0_14 = arith.constant 0 : index
    %c0_15 = arith.constant 0 : index
    %10 = vector.load %arg5[%c0_14, %c0_15] : memref<128x128xbf16, #tpu.memory_space<vmem>>, vector<128x128xbf16>
    %cst = arith.constant dense<0.000000e+00> : vector<32x128xf32>
    %11 = tpu.matmul %9, %10, %cst {dimension_numbers = #tpu.dot_dimension_numbers<[1], [0], [0], [1], [0, 0, 1, 1], [], []>} : vector<32x128xbf16>, vector<128x128xbf16>, vector<32x128xf32> -> vector<32x128xf32>
    %c0_16 = arith.constant 0 : index
    %c0_17 = arith.constant 0 : index
    %12 = vector.load %arg6[%c0_16, %c0_17] : memref<1x128xf32, #tpu.memory_space<vmem>>, vector<1x128xf32>
    %13 = vector.broadcast %12 : vector<1x128xf32> to vector<32x128xf32>
    %14 = arith.addf %11, %13 : vector<32x128xf32>
    %c0_18 = arith.constant 0 : index
    %c0_19 = arith.constant 0 : index
    %15 = vector.load %arg7[%c0_18, %c0_19] : memref<128x128xbf16, #tpu.memory_space<vmem>>, vector<128x128xbf16>
    %cst_20 = arith.constant dense<0.000000e+00> : vector<32x128xf32>
    %16 = tpu.matmul %9, %15, %cst_20 {dimension_numbers = #tpu.dot_dimension_numbers<[1], [0], [0], [1], [0, 0, 1, 1], [], []>} : vector<32x128xbf16>, vector<128x128xbf16>, vector<32x128xf32> -> vector<32x128xf32>
    %c0_21 = arith.constant 0 : index
    %c0_22 = arith.constant 0 : index
    %17 = vector.load %arg8[%c0_21, %c0_22] : memref<1x128xf32, #tpu.memory_space<vmem>>, vector<1x128xf32>
    %18 = vector.broadcast %17 : vector<1x128xf32> to vector<32x128xf32>
    %19 = arith.addf %16, %18 : vector<32x128xf32>
    %20 = arith.negf %19 : vector<32x128xf32>
    %21 = math.exp %20 : vector<32x128xf32>
    %cst_23 = arith.constant 1.000000e+00 : f32
    %22 = vector.broadcast %cst_23 : f32 to vector<32x128xf32>
    %23 = arith.addf %22, %21 : vector<32x128xf32>
    %24 = arith.divf %22, %23 : vector<32x128xf32>
    %25 = arith.mulf %14, %24 : vector<32x128xf32>
    %c16_i32 = arith.constant 16 : i32
    %26 = arith.muli %arg1, %c16_i32 : i32
    %c8_i32 = arith.constant 8 : i32
    %27 = arith.subi %26, %c8_i32 : i32
    %28 = tpu.iota {dimensions = array<i32: 0>} : vector<32x1xi32>
    %29 = vector.broadcast %27 : i32 to vector<32x1xi32>
    %30 = arith.addi %29, %28 : vector<32x1xi32>
    %c0_i32 = arith.constant 0 : i32
    %31 = vector.broadcast %c0_i32 : i32 to vector<32x1xi32>
    %32 = arith.cmpi sge, %30, %31 : vector<32x1xi32>
    %c16_i32_24 = arith.constant 16 : i32
    %33 = vector.broadcast %c16_i32_24 : i32 to vector<32x1xi32>
    %34 = arith.cmpi slt, %30, %33 : vector<32x1xi32>
    %35 = arith.andi %32, %34 : vector<32x1xi1>
    %cst_25 = arith.constant 0.000000e+00 : f32
    %36 = vector.shape_cast %35 : vector<32x1xi1> to vector<32x1xi1>
    %37 = vector.broadcast %36 : vector<32x1xi1> to vector<32x128xi1>
    %38 = vector.broadcast %cst_25 : f32 to vector<32x128xf32>
    %39 = arith.select %37, %25, %38 : vector<32x128xi1>, vector<32x128xf32>
    %c0_26 = arith.constant 0 : index
    %c0_27 = arith.constant 0 : index
    %40 = vector.load %arg9[%c0_26, %c0_27] : memref<3x128xf32, #tpu.memory_space<vmem>>, vector<3x128xf32>
    %cst_28 = arith.constant 0.000000e+00 : f32
    %41 = vector.broadcast %cst_28 : f32 to vector<16x128xf32>
    %42 = vector.extract_strided_slice %39 {offsets = [7, 0], sizes = [16, 128], strides = [1, 1]} : vector<32x128xf32> to vector<16x128xf32>
    %43 = vector.extract_strided_slice %40 {offsets = [0, 0], sizes = [1, 128], strides = [1, 1]} : vector<3x128xf32> to vector<1x128xf32>
    %44 = vector.shape_cast %43 : vector<1x128xf32> to vector<128xf32>
    %45 = vector.shape_cast %44 : vector<128xf32> to vector<1x128xf32>
    %46 = vector.broadcast %45 : vector<1x128xf32> to vector<16x128xf32>
    %47 = arith.mulf %42, %46 : vector<16x128xf32>
    %48 = arith.addf %41, %47 : vector<16x128xf32>
    %49 = vector.extract_strided_slice %39 {offsets = [8, 0], sizes = [16, 128], strides = [1, 1]} : vector<32x128xf32> to vector<16x128xf32>
    %50 = vector.extract_strided_slice %40 {offsets = [1, 0], sizes = [1, 128], strides = [1, 1]} : vector<3x128xf32> to vector<1x128xf32>
    %51 = vector.shape_cast %50 : vector<1x128xf32> to vector<128xf32>
    %52 = vector.shape_cast %51 : vector<128xf32> to vector<1x128xf32>
    %53 = vector.broadcast %52 : vector<1x128xf32> to vector<16x128xf32>
    %54 = arith.mulf %49, %53 : vector<16x128xf32>
    %55 = arith.addf %48, %54 : vector<16x128xf32>
    %56 = vector.extract_strided_slice %39 {offsets = [9, 0], sizes = [16, 128], strides = [1, 1]} : vector<32x128xf32> to vector<16x128xf32>
    %57 = vector.extract_strided_slice %40 {offsets = [2, 0], sizes = [1, 128], strides = [1, 1]} : vector<3x128xf32> to vector<1x128xf32>
    %58 = vector.shape_cast %57 : vector<1x128xf32> to vector<128xf32>
    %59 = vector.shape_cast %58 : vector<128xf32> to vector<1x128xf32>
    %60 = vector.broadcast %59 : vector<1x128xf32> to vector<16x128xf32>
    %61 = arith.mulf %56, %60 : vector<16x128xf32>
    %62 = arith.addf %55, %61 : vector<16x128xf32>
    %c0_29 = arith.constant 0 : index
    %c0_30 = arith.constant 0 : index
    %63 = vector.load %arg10[%c0_29, %c0_30] : memref<1x128xf32, #tpu.memory_space<vmem>>, vector<1x128xf32>
    %64 = vector.broadcast %63 : vector<1x128xf32> to vector<16x128xf32>
    %65 = arith.addf %62, %64 : vector<16x128xf32>
    %66 = arith.truncf %65 : vector<16x128xf32> to vector<16x128xbf16>
    %c0_31 = arith.constant 0 : index
    %c0_32 = arith.constant 0 : index
    %67 = vector.load %arg11[%c0_31, %c0_32] : memref<128x128xbf16, #tpu.memory_space<vmem>>, vector<128x128xbf16>
    %cst_33 = arith.constant dense<0.000000e+00> : vector<16x128xf32>
    %68 = tpu.matmul %66, %67, %cst_33 {dimension_numbers = #tpu.dot_dimension_numbers<[1], [0], [0], [1], [0, 0, 1, 1], [], []>} : vector<16x128xbf16>, vector<128x128xbf16>, vector<16x128xf32> -> vector<16x128xf32>
    %c0_34 = arith.constant 0 : index
    %c0_35 = arith.constant 0 : index
    %69 = vector.load %arg12[%c0_34, %c0_35] : memref<1x128xf32, #tpu.memory_space<vmem>>, vector<1x128xf32>
    %70 = vector.broadcast %69 : vector<1x128xf32> to vector<16x128xf32>
    %71 = arith.addf %68, %70 : vector<16x128xf32>
    %c0_36 = arith.constant 0 : index
    %c0_37 = arith.constant 0 : index
    %c0_38 = arith.constant 0 : index
    %72 = vector.load %arg13[%c0_36, %c0_37, %c0_38] : memref<1x16x128xf32, #tpu.memory_space<vmem>>, vector<1x16x128xf32>
    %73 = vector.shape_cast %72 : vector<1x16x128xf32> to vector<16x128xf32>
    %74 = vector.shape_cast %71 : vector<16x128xf32> to vector<1x16x128xf32>
    tpu.vector_store %arg13[%c0_36, %c0_37, %c0_38], %74 {strides = array<i32>} : memref<1x16x128xf32, #tpu.memory_space<vmem>>, vector<1x16x128xf32>,
    return
  }
  func.func @transform_0(%arg0: i32, %arg1: i32) -> (i32, i32, i32) {
    %c2_i32 = arith.constant 2 : i32
    %0 = arith.muli %arg1, %c2_i32 : i32
    %c1_i32 = arith.constant 1 : i32
    %1 = arith.subi %0, %c1_i32 : i32
    %c0_i32 = arith.constant 0 : i32
    %2 = arith.maxsi %1, %c0_i32 : i32
    %c0_i32_0 = arith.constant 0 : i32
    %c0_i32_1 = arith.constant 0 : i32
    return %arg0, %2, %c0_i32_0 : i32, i32, i32
  }
  func.func @transform_1(%arg0: i32, %arg1: i32) -> (i32, i32, i32) {
    %c0_i32 = arith.constant 0 : i32
    %c0_i32_0 = arith.constant 0 : i32
    return %arg0, %arg1, %c0_i32 : i32, i32, i32
  }
  func.func @transform_2(%arg0: i32, %arg1: i32) -> (i32, i32, i32) {
    %c1_i32 = arith.constant 1 : i32
    %0 = arith.addi %arg1, %c1_i32 : i32
    %c2_i32 = arith.constant 2 : i32
    %1 = arith.muli %0, %c2_i32 : i32
    %c0_i32 = arith.constant 0 : i32
    %c0_i32_0 = arith.constant 0 : i32
    return %arg0, %1, %c0_i32 : i32, i32, i32
  }
  func.func @transform_3(%arg0: i32, %arg1: i32) -> (i32, i32) {
    %c0_i32 = arith.constant 0 : i32
    %c0_i32_0 = arith.constant 0 : i32
    %c0_i32_1 = arith.constant 0 : i32
    return %c0_i32, %c0_i32_0 : i32, i32
  }
  func.func @transform_4(%arg0: i32, %arg1: i32) -> (i32, i32) {
    %c0_i32 = arith.constant 0 : i32
    %c0_i32_0 = arith.constant 0 : i32
    %c0_i32_1 = arith.constant 0 : i32
    return %c0_i32, %c0_i32_0 : i32, i32
  }
  func.func @transform_5(%arg0: i32, %arg1: i32) -> (i32, i32) {
    %c0_i32 = arith.constant 0 : i32
    %c0_i32_0 = arith.constant 0 : i32
    %c0_i32_1 = arith.constant 0 : i32
    return %c0_i32, %c0_i32_0 : i32, i32
  }
  func.func @transform_6(%arg0: i32, %arg1: i32) -> (i32, i32) {
    %c0_i32 = arith.constant 0 : i32
    %c0_i32_0 = arith.constant 0 : i32
    %c0_i32_1 = arith.constant 0 : i32
    return %c0_i32, %c0_i32_0 : i32, i32
  }
  func.func @transform_7(%arg0: i32, %arg1: i32) -> (i32, i32) {
    %c0_i32 = arith.constant 0 : i32
    %c0_i32_0 = arith.constant 0 : i32
    %c0_i32_1 = arith.constant 0 : i32
    return %c0_i32, %c0_i32_0 : i32, i32
  }
  func.func @transform_8(%arg0: i32, %arg1: i32) -> (i32, i32) {
    %c0_i32 = arith.constant 0 : i32
    %c0_i32_0 = arith.constant 0 : i32
    %c0_i32_1 = arith.constant 0 : i32
    return %c0_i32, %c0_i32_0 : i32, i32
  }
  func.func @transform_9(%arg0: i32, %arg1: i32) -> (i32, i32) {
    %c0_i32 = arith.constant 0 : i32
    %c0_i32_0 = arith.constant 0 : i32
    %c0_i32_1 = arith.constant 0 : i32
    return %c0_i32, %c0_i32_0 : i32, i32
  }
  func.func @transform_10(%arg0: i32, %arg1: i32) -> (i32, i32) {
    %c0_i32 = arith.constant 0 : i32
    %c0_i32_0 = arith.constant 0 : i32
    %c0_i32_1 = arith.constant 0 : i32
    return %c0_i32, %c0_i32_0 : i32, i32
  }
  func.func @transform_11(%arg0: i32, %arg1: i32) -> (i32, i32, i32) {
    %c0_i32 = arith.constant 0 : i32
    %c0_i32_0 = arith.constant 0 : i32
    return %arg0, %arg1, %c0_i32 : i32, i32, i32
  }
}

</mosaic_0001>

<llo_original>
// kernel: tpu_custom_call.1
$region0: #{tpu_custom_call.1}
  #allocation0 [shape = 'u32[]', space=smem, size = 0x4, offset = 0x4, fixed_abs, tag = 'smem constant byte address 0x4 - core index']
  #allocation1 [shape = 'u32[72,128]{1,0:T(1,128)}', space=vmem, size = 0x9000, scoped, tag = 'internal scratch']
  #allocation2 [shape = 'bf16[32,128]{1,0:T(8,128)(2,1)}', space=vmem, size = 0x2000, scoped, tag = 'scratch operand']
  %s0 = inlined_call_operand.hbm [shape: bf16[2,24,128], index: 0, kind: input, shape index: {}]
  %s1 = inlined_call_operand.hbm [shape: bf16[2,24,128], index: 1, kind: input, shape index: {}]
  %s2 = inlined_call_operand.hbm [shape: bf16[2,24,128], index: 2, kind: input, shape index: {}]
  %s3 = inlined_call_operand.hbm [shape: bf16[128,128], index: 3, kind: input, shape index: {}]
  %s4 = inlined_call_operand.vmem [shape: f32[1,128], index: 4, kind: input, shape index: {}]
  %s5 = inlined_call_operand.hbm [shape: bf16[128,128], index: 5, kind: input, shape index: {}]
  %s6 = inlined_call_operand.vmem [shape: f32[1,128], index: 6, kind: input, shape index: {}]
  %s7 = inlined_call_operand.vmem [shape: f32[3,128], index: 7, kind: input, shape index: {}]
  %s8 = inlined_call_operand.vmem [shape: f32[1,128], index: 8, kind: input, shape index: {}]
  %s9 = inlined_call_operand.hbm [shape: bf16[128,128], index: 9, kind: input, shape index: {}]
  %s10 = inlined_call_operand.vmem [shape: f32[1,128], index: 10, kind: input, shape index: {}]
  %s11 = inlined_call_operand.hbm [shape: f32[2,16,128], index: 11, kind: output, shape index: {}]
  %s12 = sld [smem:[#allocation0]]
  $region101: #{tpu_custom_call.1} parent=0
    _
  %s14 = ssub.s32 1, %s12
  %s15 = scalar_select 0, %s14, %s12
  $region1: #{tpu_custom_call.1} parent=0
    #allocation3 [shape = 'u8[4096]{0}', space=vmem, size = 0x1000, scoped, tag = 'input window, operand 0']
    #allocation4 [shape = 's32[2]{0}', space=sflag, size = 0x8, scoped, tag = 'scoped memory for tpu_custom_call.1']
    #allocation5 [shape = 's32[2]{0}', space=sflag, size = 0x8, scoped, tag = 'scoped memory for tpu_custom_call.1']
    #allocation6 [shape = 'u8[8192]{0}', space=vmem, size = 0x2000, scoped, tag = 'input window, operand 1']
    #allocation7 [shape = 's32[2]{0}', space=sflag, size = 0x8, scoped, tag = 'scoped memory for tpu_custom_call.1']
    #allocation8 [shape = 'u8[4096]{0}', space=vmem, size = 0x1000, scoped, tag = 'input window, operand 2']
    #allocation9 [shape = 'u8[32768]{0}', space=vmem, size = 0x8000, scoped, tag = 'input window, operand 3, single buffered']
    #allocation10 [shape = 's32[1]{0}', space=sflag, size = 0x4, scoped, tag = 'scoped memory for tpu_custom_call.1']
    #allocation11 [shape = 'u8[32768]{0}', space=vmem, size = 0x8000, scoped, tag = 'input window, operand 5, single buffered']
    #allocation12 [shape = 'u8[32768]{0}', space=vmem, size = 0x8000, scoped, tag = 'input window, operand 9, single buffered']
    #allocation13 [shape = 's32[1]{0}', space=sflag, size = 0x4, scoped, tag = 'scoped memory for tpu_custom_call.1']
    #allocation14 [shape = 'u8[16384]{0}', space=vmem, size = 0x4000, scoped, tag = 'output window, operand 0']
    %16 = vsyncpa [#allocation4], 0
    %s17 = scalar_lea.sflag [#allocation4], 1
    %18 = vsyncpa %s17, 0
    %19 = vsyncpa [#allocation7], 0
    %s20 = scalar_lea.sflag [#allocation7], 1
    %21 = vsyncpa %s20, 0
    %22 = vsyncpa [#allocation10], 0
    %23 = vsyncpa [#allocation13], 0
    %24 = vsyncpa [#allocation5], 0
    %s25 = scalar_lea.sflag [#allocation5], 1
    %26 = vsyncpa %s25, 0
    loop: start=0, step=1, limit=4
    $region2: #{tpu_custom_call.1} parent=1 // loop_pre_header
      _
    $region3: #{tpu_custom_call.1} parent=1 // loop_header
      %s28 = sphi 0, %s32
      %p29 = scmp.ge.s32.totalorder %s28, 4
      %s35 = sphi 0, %s47
      %s36 = sphi 0, %s43
      %s37 = sphi 0, %s35
      %s38 = sphi 0, %s36
      %s39 = sphi 0, %s37
      %s40 = sphi 0, %s38
      %s60 = sphi 0, %s62
      %s63 = sphi 0, %s60
      %s64 = sphi 0, %s63
      %s80 = sphi 0, %s64
      %s88 = sphi 0, %s90
      %s91 = sphi 0, %s88
      %s92 = sphi 0, %s91
      %s108 = sphi 0, %s92
      %s120 = sphi 0, %s122
      %s123 = sphi 0, %s120
      %s124 = sphi 0, %s123
      %s140 = sphi 0, %s124
      %s144 = sphi 0, %s144
      %s146 = sphi 0, %s144
      %s147 = sphi 0, %s146
      %s161 = sphi 0, %s147
      %s165 = sphi 0, %s165
      %s167 = sphi 0, %s165
      %s168 = sphi 0, %s167
      %s182 = sphi 0, %s168
      %s186 = sphi 0, %s186
      %s188 = sphi 0, %s186
      %s189 = sphi 0, %s188
      %s203 = sphi 0, %s189
      %s207 = sphi 0, %s207
      %s209 = sphi 0, %s207
      %s210 = sphi 0, %s209
      %s224 = sphi 0, %s210
      %s228 = sphi 0, %s228
      %s230 = sphi 0, %s228
      %s231 = sphi 0, %s230
      %s245 = sphi 0, %s231
      %s249 = sphi 0, %s249
      %s251 = sphi 0, %s249
      %s252 = sphi 0, %s251
      %s266 = sphi 0, %s252
      %s270 = sphi 0, %s270
      %s272 = sphi 0, %s270
      %s273 = sphi 0, %s272
      %s287 = sphi 0, %s273
      %s291 = sphi 0, %s291
      %s293 = sphi 0, %s291
      %s294 = sphi 0, %s293
      %s308 = sphi 0, %s294
      %s316 = sphi 0, %s318
      %s319 = sphi 0, %s316
      %s320 = sphi 0, %s319
      %s336 = sphi 0, %s320
    $region4: #{tpu_custom_call.1} parent=1 // loop_header_branch
      %31 = sbr.rel (%p29) target = $region8
    $region5: #{tpu_custom_call.1} parent=1 // loop_body
      %s33 = ssub.s32 %s28, 1
      %s34 = ssub.s32 %s28, 2
      %s41 = sadd.s32 1, %s36
      %p42 = scmp.ge.s32.totalorder %s41, 1
      %s43 = scalar_select %p42, 0, %s41
      %s44 = sadd.s32 1, %s35
      %s45 = scalar_select %p42, %s44, %s35
      %p46 = scmp.ge.s32.totalorder %s45, 2
      %s47 = scalar_select %p46, 0, %s45
      %s48 = smul.u32 %s36, 2
      %s49 = ssub.s32 %s48, 1
      %p50 = scmp.gt.s32.totalorder %s49, 0
      %s51 = scalar_select %p50, %s49, 0
      %s52 = smul.u32 %s43, 2
      %s53 = ssub.s32 %s52, 1
      %p54 = scmp.gt.s32.totalorder %s53, 0
      %s55 = scalar_select %p54, %s53, 0
      %s56 = ssub.s32 %s35, %s47
      %s57 = ssub.s32 %s51, %s55
      %s58 = sor.u32 %s56, %s57
      %p59 = scmp.eq.s32.totalorder %s58, 0
      %s61 = sadd.s32 %s60, 1
      %s62 = scalar_select %p59, %s60, %s61
      %p65 = pneg %p59
      %p66 = scmp.eq.s32.totalorder %s28, 1
      %p67 = por %p65, %p66
      %p68 = scmp.ne.s32.totalorder %s60, %s63
      %p69 = scmp.eq.s32.totalorder %s28, 0
      %p70 = por %p68, %p69
      %p71 = scmp.ne.s32.totalorder %s60, %s63
      %p72 = scmp.eq.s32.totalorder %s33, 1
      %p73 = por %p71, %p72
      %p74 = scmp.ne.s32.totalorder %s63, %s64
      %p75 = scmp.eq.s32.totalorder %s33, 0
      %p76 = por %p74, %p75
      %p77 = scmp.ne.s32.totalorder %s63, %s64
      %p78 = scmp.eq.s32.totalorder %s34, 1
      %p79 = por %p77, %p78
      %p81 = scmp.ne.s32.totalorder %s64, %s80
      %p82 = scmp.eq.s32.totalorder %s34, 0
      %p83 = por %p81, %p82
      %s84 = ssub.s32 %s35, %s47
      %s85 = ssub.s32 %s36, %s43
      %s86 = sor.u32 %s84, %s85
      %p87 = scmp.eq.s32.totalorder %s86, 0
      %s89 = sadd.s32 %s88, 1
      %s90 = scalar_select %p87, %s88, %s89
      %p93 = pneg %p87
      %p94 = scmp.eq.s32.totalorder %s28, 1
      %p95 = por %p93, %p94
      %p96 = scmp.ne.s32.totalorder %s88, %s91
      %p97 = scmp.eq.s32.totalorder %s28, 0
      %p98 = por %p96, %p97
      %p99 = scmp.ne.s32.totalorder %s88, %s91
      %p100 = scmp.eq.s32.totalorder %s33, 1
      %p101 = por %p99, %p100
      %p102 = scmp.ne.s32.totalorder %s91, %s92
      %p103 = scmp.eq.s32.totalorder %s33, 0
      %p104 = por %p102, %p103
      %p105 = scmp.ne.s32.totalorder %s91, %s92
      %p106 = scmp.eq.s32.totalorder %s34, 1
      %p107 = por %p105, %p106
      %p109 = scmp.ne.s32.totalorder %s92, %s108
      %p110 = scmp.eq.s32.totalorder %s34, 0
      %p111 = por %p109, %p110
      %s112 = sadd.s32 %s36, 1
      %s113 = smul.u32 %s112, 2
      %s114 = sadd.s32 %s43, 1
      %s115 = smul.u32 %s114, 2
      %s116 = ssub.s32 %s35, %s47
      %s117 = ssub.s32 %s113, %s115
      %s118 = sor.u32 %s116, %s117
      %p119 = scmp.eq.s32.totalorder %s118, 0
      %s121 = sadd.s32 %s120, 1
      %s122 = scalar_select %p119, %s120, %s121
      %p125 = pneg %p119
      %p126 = scmp.eq.s32.totalorder %s28, 1
      %p127 = por %p125, %p126
      %p128 = scmp.ne.s32.totalorder %s120, %s123
      %p129 = scmp.eq.s32.totalorder %s28, 0
      %p130 = por %p128, %p129
      %p131 = scmp.ne.s32.totalorder %s120, %s123
      %p132 = scmp.eq.s32.totalorder %s33, 1
      %p133 = por %p131, %p132
      %p134 = scmp.ne.s32.totalorder %s123, %s124
      %p135 = scmp.eq.s32.totalorder %s33, 0
      %p136 = por %p134, %p135
      %p137 = scmp.ne.s32.totalorder %s123, %s124
      %p138 = scmp.eq.s32.totalorder %s34, 1
      %p139 = por %p137, %p138
      %p141 = scmp.ne.s32.totalorder %s124, %s140
      %p142 = scmp.eq.s32.totalorder %s34, 0
      %p143 = por %p141, %p142
      %s145 = sadd.s32 %s144, 1
      %p148 = scmp.eq.s32.totalorder %s28, 1
      %p149 = scmp.ne.s32.totalorder %s144, %s146
      %p150 = scmp.eq.s32.totalorder %s28, 0
      %p151 = por %p149, %p150
      %p152 = scmp.ne.s32.totalorder %s144, %s146
      %p153 = scmp.eq.s32.totalorder %s33, 1
      %p154 = por %p152, %p153
      %p155 = scmp.ne.s32.totalorder %s146, %s147
      %p156 = scmp.eq.s32.totalorder %s33, 0
      %p157 = por %p155, %p156
      %p158 = scmp.ne.s32.totalorder %s146, %s147
      %p159 = scmp.eq.s32.totalorder %s34, 1
      %p160 = por %p158, %p159
      %p162 = scmp.ne.s32.totalorder %s147, %s161
      %p163 = scmp.eq.s32.totalorder %s34, 0
      %p164 = por %p162, %p163
      %s166 = sadd.s32 %s165, 1
      %p169 = scmp.eq.s32.totalorder %s28, 1
      %p170 = scmp.ne.s32.totalorder %s165, %s167
      %p171 = scmp.eq.s32.totalorder %s28, 0
      %p172 = por %p170, %p171
      %p173 = scmp.ne.s32.totalorder %s165, %s167
      %p174 = scmp.eq.s32.totalorder %s33, 1
      %p175 = por %p173, %p174
      %p176 = scmp.ne.s32.totalorder %s167, %s168
      %p177 = scmp.eq.s32.totalorder %s33, 0
      %p178 = por %p176, %p177
      %p179 = scmp.ne.s32.totalorder %s167, %s168
      %p180 = scmp.eq.s32.totalorder %s34, 1
      %p181 = por %p179, %p180
      %p183 = scmp.ne.s32.totalorder %s168, %s182
      %p184 = scmp.eq.s32.totalorder %s34, 0
      %p185 = por %p183, %p184
      %s187 = sadd.s32 %s186, 1
      %p190 = scmp.eq.s32.totalorder %s28, 1
      %p191 = scmp.ne.s32.totalorder %s186, %s188
      %p192 = scmp.eq.s32.totalorder %s28, 0
      %p193 = por %p191, %p192
      %p194 = scmp.ne.s32.totalorder %s186, %s188
      %p195 = scmp.eq.s32.totalorder %s33, 1
      %p196 = por %p194, %p195
      %p197 = scmp.ne.s32.totalorder %s188, %s189
      %p198 = scmp.eq.s32.totalorder %s33, 0
      %p199 = por %p197, %p198
      %p200 = scmp.ne.s32.totalorder %s188, %s189
      %p201 = scmp.eq.s32.totalorder %s34, 1
      %p202 = por %p200, %p201
      %p204 = scmp.ne.s32.totalorder %s189, %s203
      %p205 = scmp.eq.s32.totalorder %s34, 0
      %p206 = por %p204, %p205
      %s208 = sadd.s32 %s207, 1
      %p211 = scmp.eq.s32.totalorder %s28, 1
      %p212 = scmp.ne.s32.totalorder %s207, %s209
      %p213 = scmp.eq.s32.totalorder %s28, 0
      %p214 = por %p212, %p213
      %p215 = scmp.ne.s32.totalorder %s207, %s209
      %p216 = scmp.eq.s32.totalorder %s33, 1
      %p217 = por %p215, %p216
      %p218 = scmp.ne.s32.totalorder %s209, %s210
      %p219 = scmp.eq.s32.totalorder %s33, 0
      %p220 = por %p218, %p219
      %p221 = scmp.ne.s32.totalorder %s209, %s210
      %p222 = scmp.eq.s32.totalorder %s34, 1
      %p223 = por %p221, %p222
      %p225 = scmp.ne.s32.totalorder %s210, %s224
      %p226 = scmp.eq.s32.totalorder %s34, 0
      %p227 = por %p225, %p226
      %s229 = sadd.s32 %s228, 1
      %p232 = scmp.eq.s32.totalorder %s28, 1
      %p233 = scmp.ne.s32.totalorder %s228, %s230
      %p234 = scmp.eq.s32.totalorder %s28, 0
      %p235 = por %p233, %p234
      %p236 = scmp.ne.s32.totalorder %s228, %s230
      %p237 = scmp.eq.s32.totalorder %s33, 1
      %p238 = por %p236, %p237
      %p239 = scmp.ne.s32.totalorder %s230, %s231
      %p240 = scmp.eq.s32.totalorder %s33, 0
      %p241 = por %p239, %p240
      %p242 = scmp.ne.s32.totalorder %s230, %s231
      %p243 = scmp.eq.s32.totalorder %s34, 1
      %p244 = por %p242, %p243
      %p246 = scmp.ne.s32.totalorder %s231, %s245
      %p247 = scmp.eq.s32.totalorder %s34, 0
      %p248 = por %p246, %p247
      %s250 = sadd.s32 %s249, 1
      %p253 = scmp.eq.s32.totalorder %s28, 1
      %p254 = scmp.ne.s32.totalorder %s249, %s251
      %p255 = scmp.eq.s32.totalorder %s28, 0
      %p256 = por %p254, %p255
      %p257 = scmp.ne.s32.totalorder %s249, %s251
      %p258 = scmp.eq.s32.totalorder %s33, 1
      %p259 = por %p257, %p258
      %p260 = scmp.ne.s32.totalorder %s251, %s252
      %p261 = scmp.eq.s32.totalorder %s33, 0
      %p262 = por %p260, %p261
      %p263 = scmp.ne.s32.totalorder %s251, %s252
      %p264 = scmp.eq.s32.totalorder %s34, 1
      %p265 = por %p263, %p264
      %p267 = scmp.ne.s32.totalorder %s252, %s266
      %p268 = scmp.eq.s32.totalorder %s34, 0
      %p269 = por %p267, %p268
      %s271 = sadd.s32 %s270, 1
      %p274 = scmp.eq.s32.totalorder %s28, 1
      %p275 = scmp.ne.s32.totalorder %s270, %s272
      %p276 = scmp.eq.s32.totalorder %s28, 0
      %p277 = por %p275, %p276
      %p278 = scmp.ne.s32.totalorder %s270, %s272
      %p279 = scmp.eq.s32.totalorder %s33, 1
      %p280 = por %p278, %p279
      %p281 = scmp.ne.s32.totalorder %s272, %s273
      %p282 = scmp.eq.s32.totalorder %s33, 0
      %p283 = por %p281, %p282
      %p284 = scmp.ne.s32.totalorder %s272, %s273
      %p285 = scmp.eq.s32.totalorder %s34, 1
      %p286 = por %p284, %p285
      %p288 = scmp.ne.s32.totalorder %s273, %s287
      %p289 = scmp.eq.s32.totalorder %s34, 0
      %p290 = por %p288, %p289
      %s292 = sadd.s32 %s291, 1
      %p295 = scmp.eq.s32.totalorder %s28, 1
      %p296 = scmp.ne.s32.totalorder %s291, %s293
      %p297 = scmp.eq.s32.totalorder %s28, 0
      %p298 = por %p296, %p297
      %p299 = scmp.ne.s32.totalorder %s291, %s293
      %p300 = scmp.eq.s32.totalorder %s33, 1
      %p301 = por %p299, %p300
      %p302 = scmp.ne.s32.totalorder %s293, %s294
      %p303 = scmp.eq.s32.totalorder %s33, 0
      %p304 = por %p302, %p303
      %p305 = scmp.ne.s32.totalorder %s293, %s294
      %p306 = scmp.eq.s32.totalorder %s34, 1
      %p307 = por %p305, %p306
      %p309 = scmp.ne.s32.totalorder %s294, %s308
      %p310 = scmp.eq.s32.totalorder %s34, 0
      %p311 = por %p309, %p310
      %s312 = ssub.s32 %s35, %s47
      %s313 = ssub.s32 %s36, %s43
      %s314 = sor.u32 %s312, %s313
      %p315 = scmp.eq.s32.totalorder %s314, 0
      %s317 = sadd.s32 %s316, 1
      %s318 = scalar_select %p315, %s316, %s317
      %p321 = pneg %p315
      %p322 = scmp.eq.s32.totalorder %s28, 1
      %p323 = por %p321, %p322
      %p324 = scmp.ne.s32.totalorder %s316, %s319
      %p325 = scmp.eq.s32.totalorder %s28, 0
      %p326 = por %p324, %p325
      %p327 = scmp.ne.s32.totalorder %s316, %s319
      %p328 = scmp.eq.s32.totalorder %s33, 1
      %p329 = por %p327, %p328
      %p330 = scmp.ne.s32.totalorder %s319, %s320
      %p331 = scmp.eq.s32.totalorder %s33, 0
      %p332 = por %p330, %p331
      %p333 = scmp.ne.s32.totalorder %s319, %s320
      %p334 = scmp.eq.s32.totalorder %s34, 1
      %p335 = por %p333, %p334
      %p337 = scmp.ne.s32.totalorder %s320, %s336
      %p338 = scmp.eq.s32.totalorder %s34, 0
      %p339 = por %p337, %p338
      %p340 = scmp.le.s32.totalorder 1, %s28
      %p341 = scmp.lt.s32.totalorder %s28, 3
      %p342 = pnand %p340, %p341
      %p343 = pneg %p342
      // Predicated region
      $region9: #{tpu_custom_call.1} parent=5 // pred_check
        _
      $region10: #{tpu_custom_call.1} parent=5 // pred_check_branch
        %345 = sbr.rel (%p342) target = $region12
      $region11: #{tpu_custom_call.1} parent=5 // pred_region
        %s346 = ssub.s32 %s28, 1
        // Predicated region
        $region13: #{tpu_custom_call.1} parent=11 // pred_check
          %p347 = pneg %p157
        $region14: #{tpu_custom_call.1} parent=11 // pred_check_branch
          %349 = sbr.rel (%p347) target = $region16
        $region15: #{tpu_custom_call.1} parent=11 // pred_region
          %351 = vsyncadd [#allocation10], 0
          %s352 = sshll.u32 %s3, 4
          %s353 = int_to_ptr.hbm [resolvable:$true] %s352
          %s354 = sshll.u32 [#allocation9], 4
          %s355 = int_to_ptr.vmem [resolvable:$true] %s354
          %360 = dma.hbm_to_vmem [thread:$0]  %s353, 1024, %s355, [#allocation10], 64, 64, 4
        $region16: #{tpu_custom_call.1} parent=11 // pred_fallthru
          _
        // Predicated region
        $region17: #{tpu_custom_call.1} parent=11 // pred_check
          %p361 = pneg %p178
        $region18: #{tpu_custom_call.1} parent=11 // pred_check_branch
          %363 = sbr.rel (%p361) target = $region20
        $region19: #{tpu_custom_call.1} parent=11 // pred_region
          _
        $region20: #{tpu_custom_call.1} parent=11 // pred_fallthru
          _
        // Predicated region
        $region21: #{tpu_custom_call.1} parent=11 // pred_check
          %p364 = pneg %p199
        $region22: #{tpu_custom_call.1} parent=11 // pred_check_branch
          %366 = sbr.rel (%p364) target = $region24
        $region23: #{tpu_custom_call.1} parent=11 // pred_region
          %368 = vsyncadd [#allocation10], 0
          %s369 = sshll.u32 %s5, 4
          %s370 = int_to_ptr.hbm [resolvable:$true] %s369
          %s371 = sshll.u32 [#allocation11], 4
          %s372 = int_to_ptr.vmem [resolvable:$true] %s371
          %377 = dma.hbm_to_vmem [thread:$0]  %s370, 1024, %s372, [#allocation10], 64, 64, 4
        $region24: #{tpu_custom_call.1} parent=11 // pred_fallthru
          _
        // Predicated region
        $region25: #{tpu_custom_call.1} parent=11 // pred_check
          %p378 = pneg %p220
        $region26: #{tpu_custom_call.1} parent=11 // pred_check_branch
          %380 = sbr.rel (%p378) target = $region28
        $region27: #{tpu_custom_call.1} parent=11 // pred_region
          _
        $region28: #{tpu_custom_call.1} parent=11 // pred_fallthru
          _
        // Predicated region
        $region29: #{tpu_custom_call.1} parent=11 // pred_check
          %p381 = pneg %p241
        $region30: #{tpu_custom_call.1} parent=11 // pred_check_branch
          %383 = sbr.rel (%p381) target = $region32
        $region31: #{tpu_custom_call.1} parent=11 // pred_region
          _
        $region32: #{tpu_custom_call.1} parent=11 // pred_fallthru
          _
        // Predicated region
        $region33: #{tpu_custom_call.1} parent=11 // pred_check
          %p384 = pneg %p262
        $region34: #{tpu_custom_call.1} parent=11 // pred_check_branch
          %386 = sbr.rel (%p384) target = $region36
        $region35: #{tpu_custom_call.1} parent=11 // pred_region
          _
        $region36: #{tpu_custom_call.1} parent=11 // pred_fallthru
          _
        // Predicated region
        $region37: #{tpu_custom_call.1} parent=11 // pred_check
          %p387 = pneg %p283
        $region38: #{tpu_custom_call.1} parent=11 // pred_check_branch
          %389 = sbr.rel (%p387) target = $region40
        $region39: #{tpu_custom_call.1} parent=11 // pred_region
          %391 = vsyncadd [#allocation13], 0
          %s392 = sshll.u32 %s9, 4
          %s393 = int_to_ptr.hbm [resolvable:$true] %s392
          %s394 = sshll.u32 [#allocation12], 4
          %s395 = int_to_ptr.vmem [resolvable:$true] %s394
          %400 = dma.hbm_to_vmem [thread:$0]  %s393, 1024, %s395, [#allocation13], 64, 64, 4
        $region40: #{tpu_custom_call.1} parent=11 // pred_fallthru
          _
        // Predicated region
        $region41: #{tpu_custom_call.1} parent=11 // pred_check
          %p401 = pneg %p304
        $region42: #{tpu_custom_call.1} parent=11 // pred_check_branch
          %403 = sbr.rel (%p401) target = $region44
        $region43: #{tpu_custom_call.1} parent=11 // pred_region
          _
        $region44: #{tpu_custom_call.1} parent=11 // pred_fallthru
          _
      $region12: #{tpu_custom_call.1} parent=5 // pred_fallthru
        _
      %p404 = scmp.lt.s32.totalorder %s28, 2
      // Predicated region
      $region45: #{tpu_custom_call.1} parent=5 // pred_check
        %p405 = pneg %p404
      $region46: #{tpu_custom_call.1} parent=5 // pred_check_branch
        %407 = sbr.rel (%p405) target = $region48
      $region47: #{tpu_custom_call.1} parent=5 // pred_region
        // Predicated region
        $region49: #{tpu_custom_call.1} parent=47 // pred_check
          %p408 = pneg %p70
        $region50: #{tpu_custom_call.1} parent=47 // pred_check_branch
          %410 = sbr.rel (%p408) target = $region52
        $region51: #{tpu_custom_call.1} parent=47 // pred_region
          %s411 = sand.u32 %s60, 1
          %s412 = scalar_lea.sflag [#allocation4], %s411
          %s413 = sand.u32 %s60, 1
          %s414 = smul.addr %s413, 4
          %s415 = scalar_lea.vmem [#allocation3], %s414
          %s416 = smul.u32 %s36, 2
          %s417 = ssub.s32 %s416, 1
          %p418 = scmp.gt.s32.totalorder %s417, 0
          %s419 = scalar_select %p418, %s417, 0
          %421 = vsyncadd %s412, 0
          %s422 = smul.addr %s35, 3
          %s423 = sadd.s32 %s419, %s422
          %s424 = smul.addr %s423, 4
          %s425 = scalar_lea.hbm %s0, %s424
          %s427 = sshll.u32 %s425, 4
          %s428 = int_to_ptr.hbm [resolvable:$true] %s427
          %s429 = sshll.u32 %s415, 4
          %s430 = int_to_ptr.vmem [resolvable:$true] %s429
          %432 = dma.hbm_to_vmem [thread:$0]  %s428, 64, %s430, %s412
        $region52: #{tpu_custom_call.1} parent=47 // pred_fallthru
          _
        // Predicated region
        $region53: #{tpu_custom_call.1} parent=47 // pred_check
          %p433 = pneg %p98
        $region54: #{tpu_custom_call.1} parent=47 // pred_check_branch
          %435 = sbr.rel (%p433) target = $region56
        $region55: #{tpu_custom_call.1} parent=47 // pred_region
          %s436 = sand.u32 %s28, 1
          %s437 = scalar_lea.sflag [#allocation7], %s436
          %s438 = sand.u32 %s88, 1
          %s439 = smul.addr %s438, 8
          %s440 = scalar_lea.vmem [#allocation6], %s439
          %s441 = smul.u32 2, %s36
          %s442 = ssub.s32 3, %s441
          %p443 = scmp.lt.s32.totalorder %s442, 2
          %s444 = scalar_select %p443, %s442, 2
          %s445 = smul.u32 4, %s444
          %s446 = ssub.s32 8, %s445
          %s447 = sshll.u32 %s446, 4
          %448 = vsyncadd %s437, %s447
          %p449 = scmp.ne.s32.totalorder 0, %s445
          %s450 = smul.addr %s35, 3
          %s451 = sadd.s32 %s441, %s450
          %s452 = smul.addr %s451, 4
          %s453 = scalar_lea.hbm %s1, %s452
          %s454 = smul.u32 4, %s444
          %s455 = sshll.u32 %s453, 4
          %s456 = int_to_ptr.hbm [resolvable:$true] %s455
          %s457 = sshll.u32 %s440, 4
          %s458 = int_to_ptr.vmem [resolvable:$true] %s457
          %s459 = sshll.u32 %s454, 4
          %463 = dma.hbm_to_vmem [thread:$0]  (%p449), %s456, %s459, %s458, %s437, 64, 64, 4
        $region56: #{tpu_custom_call.1} parent=47 // pred_fallthru
          _
        // Predicated region
        $region57: #{tpu_custom_call.1} parent=47 // pred_check
          %p464 = pneg %p130
        $region58: #{tpu_custom_call.1} parent=47 // pred_check_branch
          %466 = sbr.rel (%p464) target = $region60
        $region59: #{tpu_custom_call.1} parent=47 // pred_region
          %s467 = sand.u32 %s28, 1
          %s468 = scalar_lea.sflag [#allocation7], %s467
          %s469 = sand.u32 %s120, 1
          %s470 = smul.addr %s469, 4
          %s471 = scalar_lea.vmem [#allocation8], %s470
          %s472 = sadd.s32 %s36, 1
          %s473 = smul.u32 %s472, 2
          %475 = vsyncadd %s468, 0
          %s476 = smul.addr %s35, 3
          %s477 = sadd.s32 %s473, %s476
          %s478 = smul.addr %s477, 4
          %s479 = scalar_lea.hbm %s2, %s478
          %s481 = sshll.u32 %s479, 4
          %s482 = int_to_ptr.hbm [resolvable:$true] %s481
          %s483 = sshll.u32 %s471, 4
          %s484 = int_to_ptr.vmem [resolvable:$true] %s483
          %486 = dma.hbm_to_vmem [thread:$0]  %s482, 64, %s484, %s468
        $region60: #{tpu_custom_call.1} parent=47 // pred_fallthru
          _
      $region48: #{tpu_custom_call.1} parent=5 // pred_fallthru
        _
      %p487 = scmp.le.s32.totalorder 1, %s28
      %p488 = scmp.lt.s32.totalorder %s28, 3
      %p489 = pnand %p487, %p488
      %p490 = pneg %p489
      // Predicated region
      $region61: #{tpu_custom_call.1} parent=5 // pred_check
        _
      $region62: #{tpu_custom_call.1} parent=5 // pred_check_branch
        %492 = sbr.rel (%p489) target = $region64
      $region63: #{tpu_custom_call.1} parent=5 // pred_region
        %s493 = ssub.s32 %s28, 1
        %s494 = sand.u32 %s63, 1
        %s495 = scalar_lea.sflag [#allocation4], %s494
        %s496 = sand.u32 %s63, 1
        %s497 = smul.addr %s496, 4
        %s498 = scalar_lea.vmem [#allocation3], %s497
        // Predicated region
        $region65: #{tpu_custom_call.1} parent=63 // pred_check
          %p499 = pneg %p76
        $region66: #{tpu_custom_call.1} parent=63 // pred_check_branch
          %501 = sbr.rel (%p499) target = $region68
        $region67: #{tpu_custom_call.1} parent=63 // pred_region
          %503 = dma.done %s495, 64
        $region68: #{tpu_custom_call.1} parent=63 // pred_fallthru
          _
        %s504 = sand.u32 %s33, 1
        %s505 = scalar_lea.sflag [#allocation7], %s504
        %s506 = sand.u32 %s91, 1
        %s507 = smul.addr %s506, 8
        %s508 = scalar_lea.vmem [#allocation6], %s507
        // Predicated region
        $region69: #{tpu_custom_call.1} parent=63 // pred_check
          %p509 = pneg %p104
        $region70: #{tpu_custom_call.1} parent=63 // pred_check_branch
          %511 = sbr.rel (%p509) target = $region72
        $region71: #{tpu_custom_call.1} parent=63 // pred_region
          %513 = dma.done %s505, 128
        $region72: #{tpu_custom_call.1} parent=63 // pred_fallthru
          _
        %s514 = sand.u32 %s33, 1
        %s515 = scalar_lea.sflag [#allocation7], %s514
        %s516 = sand.u32 %s123, 1
        %s517 = smul.addr %s516, 4
        %s518 = scalar_lea.vmem [#allocation8], %s517
        // Predicated region
        $region73: #{tpu_custom_call.1} parent=63 // pred_check
          %p519 = pneg %p136
        $region74: #{tpu_custom_call.1} parent=63 // pred_check_branch
          %521 = sbr.rel (%p519) target = $region76
        $region75: #{tpu_custom_call.1} parent=63 // pred_region
          %523 = dma.done %s515, 64
        $region76: #{tpu_custom_call.1} parent=63 // pred_fallthru
          _
        // Predicated region
        $region77: #{tpu_custom_call.1} parent=63 // pred_check
          %p524 = pneg %p157
        $region78: #{tpu_custom_call.1} parent=63 // pred_check_branch
          %526 = sbr.rel (%p524) target = $region80
        $region79: #{tpu_custom_call.1} parent=63 // pred_region
          %528 = dma.done [#allocation10], 1024
        $region80: #{tpu_custom_call.1} parent=63 // pred_fallthru
          _
        // Predicated region
        $region81: #{tpu_custom_call.1} parent=63 // pred_check
          %p529 = pneg %p199
        $region82: #{tpu_custom_call.1} parent=63 // pred_check_branch
          %531 = sbr.rel (%p529) target = $region84
        $region83: #{tpu_custom_call.1} parent=63 // pred_region
          %533 = dma.done [#allocation10], 1024
        $region84: #{tpu_custom_call.1} parent=63 // pred_fallthru
          _
        // Predicated region
        $region85: #{tpu_custom_call.1} parent=63 // pred_check
          %p534 = pneg %p283
        $region86: #{tpu_custom_call.1} parent=63 // pred_check_branch
          %536 = sbr.rel (%p534) target = $region88
        $region87: #{tpu_custom_call.1} parent=63 // pred_region
          %538 = dma.done [#allocation13], 1024
        $region88: #{tpu_custom_call.1} parent=63 // pred_fallthru
          _
        %s539 = sand.u32 %s63, 1
        %s540 = scalar_lea.sflag [#allocation4], %s539
        %s541 = sand.u32 %s63, 1
        %s542 = smul.addr %s541, 4
        %s543 = scalar_lea.vmem [#allocation3], %s542
        %p544 = pneg %p76
        %p545 = pneg %p73
        %s546 = sand.u32 %s33, 1
        %s547 = scalar_lea.sflag [#allocation7], %s546
        %s548 = sand.u32 %s91, 1
        %s549 = smul.addr %s548, 8
        %s550 = scalar_lea.vmem [#allocation6], %s549
        %p551 = pneg %p104
        %p552 = pneg %p101
        %s553 = sand.u32 %s33, 1
        %s554 = scalar_lea.sflag [#allocation7], %s553
        %s555 = sand.u32 %s123, 1
        %s556 = smul.addr %s555, 4
        %s557 = scalar_lea.vmem [#allocation8], %s556
        %p558 = pneg %p136
        %p559 = pneg %p133
        %p560 = pneg %p157
        %p561 = pneg %p154
        %p562 = pneg %p178
        %p563 = pneg %p175
        %p564 = pneg %p199
        %p565 = pneg %p196
        %p566 = pneg %p220
        %p567 = pneg %p217
        %p568 = pneg %p241
        %p569 = pneg %p238
        %p570 = pneg %p262
        %p571 = pneg %p259
        %p572 = pneg %p283
        %p573 = pneg %p280
        %p574 = pneg %p304
        %p575 = pneg %p301
        %p576 = pneg %p332
        %p577 = pneg %p329
        %s578 = sand.u32 %s319, 1
        %s579 = scalar_lea.sflag [#allocation5], %s578
        %s580 = sand.u32 %s319, 1
        %s581 = smul.addr %s580, 16
        %s582 = scalar_lea.vmem [#allocation14], %s581
        %s583 = smul.u32 %s38, 2
        %s584 = ssub.s32 %s583, 1
        %p585 = scmp.gt.s32.totalorder %s584, 0
        %s586 = scalar_select %p585, %s584, 0
        %s587 = smul.u32 2, %s38
        %s588 = ssub.s32 3, %s587
        %p589 = scmp.lt.s32.totalorder %s588, 2
        %s590 = scalar_select %p589, %s588, 2
        %s591 = smul.u32 4, %s590
        %s592 = sadd.s32 %s38, 1
        %s593 = smul.u32 %s592, 2
        %s594 = smul.u32 2, %s38
        %v595 = vld [vmem:[%s498] sm:$0xf]
        %596 = vst [vmem:[#allocation2] sm:$0xf] %v595
        %v597 = vld [vmem:[%s508] sm:$0xf]
        %v598 = vld [vmem:[%s508 + $0x4] sm:$0xf]
        %599 = vst [vmem:[#allocation2 + $0x4] sm:$0xf] %v597
        %600 = vst [vmem:[#allocation2 + $0x8] sm:$0xf] %v598
        %v601 = vld [vmem:[%s518] sm:$0xf]
        %602 = vst [vmem:[#allocation2 + $0xc] sm:$0xf] %v601
        %v603 = vld [vmem:[#allocation2] sm:$0xf]
        %v604 = vld [vmem:[#allocation2 + $0x4] sm:$0xf]
        %v605 = vld [vmem:[#allocation2 + $0x8] sm:$0xf]
        %v606 = vld [vmem:[#allocation2 + $0xc] sm:$0xf]
        %v607 = vld [vmem:[#allocation9] sm:$0xf]
        %v608 = vld [vmem:[#allocation9 + $0x4] sm:$0xf]
        %v609 = vld [vmem:[#allocation9 + $0x8] sm:$0xf]
        %v610 = vld [vmem:[#allocation9 + $0xc] sm:$0xf]
        %v611 = vld [vmem:[#allocation9 + $0x10] sm:$0xf]
        %v612 = vld [vmem:[#allocation9 + $0x14] sm:$0xf]
        %v613 = vld [vmem:[#allocation9 + $0x18] sm:$0xf]
        %v614 = vld [vmem:[#allocation9 + $0x1c] sm:$0xf]
        %v615 = vld [vmem:[#allocation9 + $0x20] sm:$0xf]
        %v616 = vld [vmem:[#allocation9 + $0x24] sm:$0xf]
        %v617 = vld [vmem:[#allocation9 + $0x28] sm:$0xf]
        %v618 = vld [vmem:[#allocation9 + $0x2c] sm:$0xf]
        %v619 = vld [vmem:[#allocation9 + $0x30] sm:$0xf]
        %v620 = vld [vmem:[#allocation9 + $0x34] sm:$0xf]
        %v621 = vld [vmem:[#allocation9 + $0x38] sm:$0xf]
        %v622 = vld [vmem:[#allocation9 + $0x3c] sm:$0xf]
        %v623 = vld [vmem:[%s4] sm:$0x1]
        %v625 = vperm.slane %v623, 0
        %v631 = vunpack.c.l.b16 %v603
        %v632 = vunpack.c.l.b16 %v604
        %v633 = vunpack.c.l.b16 %v605
        %v634 = vunpack.c.l.b16 %v606
        %v635 = vpack.c.b16 %v632, %v631
        %v636 = vpack.c.b16 %v634, %v633
        %v655 = vunpack.c.l.b16 %v607
        %v656 = vunpack.c.l.b16 %v608
        %v657 = vunpack.c.l.b16 %v609
        %v658 = vunpack.c.l.b16 %v610
        %v659 = vunpack.c.l.b16 %v611
        %v660 = vunpack.c.l.b16 %v612
        %v661 = vunpack.c.l.b16 %v613
        %v662 = vunpack.c.l.b16 %v614
        %v663 = vunpack.c.l.b16 %v615
        %v664 = vunpack.c.l.b16 %v616
        %v665 = vunpack.c.l.b16 %v617
        %v666 = vunpack.c.l.b16 %v618
        %v667 = vunpack.c.l.b16 %v619
        %v668 = vunpack.c.l.b16 %v620
        %v669 = vunpack.c.l.b16 %v621
        %v670 = vunpack.c.l.b16 %v622
        %v671 = vpack.c.b16 %v656, %v655
        %v672 = vpack.c.b16 %v658, %v657
        %v673 = vpack.c.b16 %v660, %v659
        %v674 = vpack.c.b16 %v662, %v661
        %v675 = vpack.c.b16 %v664, %v663
        %v676 = vpack.c.b16 %v666, %v665
        %v677 = vpack.c.b16 %v668, %v667
        %v678 = vpack.c.b16 %v670, %v669
        %687 = vmatpush.bf16.msra.mxu0 %v678
        %688 = vmatpush.bf16.msra.mxu0 %v677
        %689 = vmatpush.bf16.msra.mxu0 %v676
        %690 = vmatpush.bf16.msra.mxu0 %v675
        %691 = vmatpush.bf16.msra.mxu0 %v674
        %692 = vmatpush.bf16.msra.mxu0 %v673
        %693 = vmatpush.bf16.msra.mxu0 %v672
        %694 = vmatpush.bf16.msra.mxu0 %v671
        %695 = vmatmul.bf16.gmra.mxu0 %v635
        %v696 = vpop.f32.mrf.mxu0
        %v697 = vadd.f32 %v625, %v696
        %v698 = vpop.f32.mrf.mxu0
        %v699 = vadd.f32 %v625, %v698
        %700 = vmatmul.bf16.gmra.mxu0 %v636
        %v701 = vpop.f32.mrf.mxu0
        %v702 = vadd.f32 %v625, %v701
        %v703 = vpop.f32.mrf.mxu0
        %v704 = vadd.f32 %v625, %v703
        %705 = vdwg.mxu0
        %v706 = vld [vmem:[#allocation11] sm:$0xf]
        %v707 = vld [vmem:[#allocation11 + $0x4] sm:$0xf]
        %v708 = vld [vmem:[#allocation11 + $0x8] sm:$0xf]
        %v709 = vld [vmem:[#allocation11 + $0xc] sm:$0xf]
        %v710 = vld [vmem:[#allocation11 + $0x10] sm:$0xf]
        %v711 = vld [vmem:[#allocation11 + $0x14] sm:$0xf]
        %v712 = vld [vmem:[#allocation11 + $0x18] sm:$0xf]
        %v713 = vld [vmem:[#allocation11 + $0x1c] sm:$0xf]
        %v714 = vld [vmem:[#allocation11 + $0x20] sm:$0xf]
        %v715 = vld [vmem:[#allocation11 + $0x24] sm:$0xf]
        %v716 = vld [vmem:[#allocation11 + $0x28] sm:$0xf]
        %v717 = vld [vmem:[#allocation11 + $0x2c] sm:$0xf]
        %v718 = vld [vmem:[#allocation11 + $0x30] sm:$0xf]
        %v719 = vld [vmem:[#allocation11 + $0x34] sm:$0xf]
        %v720 = vld [vmem:[#allocation11 + $0x38] sm:$0xf]
        %v721 = vld [vmem:[#allocation11 + $0x3c] sm:$0xf]
        %v722 = vld [vmem:[%s6] sm:$0x1]
        %v724 = vperm.slane %v722, 0
        %v742 = vunpack.c.l.b16 %v706
        %v743 = vunpack.c.l.b16 %v707
        %v744 = vunpack.c.l.b16 %v708
        %v745 = vunpack.c.l.b16 %v709
        %v746 = vunpack.c.l.b16 %v710
        %v747 = vunpack.c.l.b16 %v711
        %v748 = vunpack.c.l.b16 %v712
        %v749 = vunpack.c.l.b16 %v713
        %v750 = vunpack.c.l.b16 %v714
        %v751 = vunpack.c.l.b16 %v715
        %v752 = vunpack.c.l.b16 %v716
        %v753 = vunpack.c.l.b16 %v717
        %v754 = vunpack.c.l.b16 %v718
        %v755 = vunpack.c.l.b16 %v719
        %v756 = vunpack.c.l.b16 %v720
        %v757 = vunpack.c.l.b16 %v721
        %v758 = vpack.c.b16 %v743, %v742
        %v759 = vpack.c.b16 %v745, %v744
        %v760 = vpack.c.b16 %v747, %v746
        %v761 = vpack.c.b16 %v749, %v748
        %v762 = vpack.c.b16 %v751, %v750
        %v763 = vpack.c.b16 %v753, %v752
        %v764 = vpack.c.b16 %v755, %v754
        %v765 = vpack.c.b16 %v757, %v756
        %774 = vmatpush.bf16.msra.mxu0 %v765
        %775 = vmatpush.bf16.msra.mxu0 %v764
        %776 = vmatpush.bf16.msra.mxu0 %v763
        %777 = vmatpush.bf16.msra.mxu0 %v762
        %778 = vmatpush.bf16.msra.mxu0 %v761
        %779 = vmatpush.bf16.msra.mxu0 %v760
        %780 = vmatpush.bf16.msra.mxu0 %v759
        %781 = vmatpush.bf16.msra.mxu0 %v758
        %782 = vmatmul.bf16.gmra.mxu0 %v635
        %v783 = vpop.f32.mrf.mxu0
        %v784 = vadd.f32 %v724, %v783
        %v785 = vpop.f32.mrf.mxu0
        %v786 = vadd.f32 %v724, %v785
        %787 = vmatmul.bf16.gmra.mxu0 %v636
        %v788 = vpop.f32.mrf.mxu0
        %v789 = vadd.f32 %v724, %v788
        %v790 = vpop.f32.mrf.mxu0
        %v791 = vadd.f32 %v724, %v790
        %792 = vdwg.mxu0
        %v793 = vxor.u32 %v784, 2147483648
        %v794 = vxor.u32 %v786, 2147483648
        %v795 = vxor.u32 %v789, 2147483648
        %v796 = vxor.u32 %v791, 2147483648
        %v797 = vmul.f32 %v793, 1.442695
        %v798 = vpow.pop %v797
        %v799 = vmul.f32 %v794, 1.442695
        %v800 = vpow.pop %v799
        %v801 = vmul.f32 %v795, 1.442695
        %v802 = vpow.pop %v801
        %v803 = vmul.f32 %v796, 1.442695
        %v804 = vpow.pop %v803
        %v805 = vadd.f32 %v798, 1.0
        %v806 = vadd.f32 %v800, 1.0
        %v807 = vadd.f32 %v802, 1.0
        %v808 = vadd.f32 %v804, 1.0
        %v809 = vrcp.pop %v805
        %v810 = vmul.f32 %v805, %v809
        %v811 = vsub.f32 1.0, %v810
        %v812 = vmul.f32 %v809, %v811
        %v813 = vadd.f32 %v809, %v812
        %vm814 = vweird.f32 %v805
        %vm815 = vweird.f32 %v809
        %vm816 = vmor %vm814, %vm815
        %v817 = vsel %vm816, %v809, %v813
        %v818 = vand.u32 2147483647, %v805
        %vm819 = vcmp.eq.f32.partialorder %v818, 8.507059e+37
        %v820 = vand.u32 %v805, 2147483648
        %v821 = vor.u32 1.1754944e-38, %v820
        %v822 = vsel %vm819, %v821, %v817
        %v823 = vmul.f32 1.0, %v822
        %v824 = vrcp.pop %v806
        %v825 = vmul.f32 %v806, %v824
        %v826 = vsub.f32 1.0, %v825
        %v827 = vmul.f32 %v824, %v826
        %v828 = vadd.f32 %v824, %v827
        %vm829 = vweird.f32 %v806
        %vm830 = vweird.f32 %v824
        %vm831 = vmor %vm829, %vm830
        %v832 = vsel %vm831, %v824, %v828
        %v833 = vand.u32 2147483647, %v806
        %vm834 = vcmp.eq.f32.partialorder %v833, 8.507059e+37
        %v835 = vand.u32 %v806, 2147483648
        %v836 = vor.u32 1.1754944e-38, %v835
        %v837 = vsel %vm834, %v836, %v832
        %v838 = vmul.f32 1.0, %v837
        %v839 = vrcp.pop %v807
        %v840 = vmul.f32 %v807, %v839
        %v841 = vsub.f32 1.0, %v840
        %v842 = vmul.f32 %v839, %v841
        %v843 = vadd.f32 %v839, %v842
        %vm844 = vweird.f32 %v807
        %vm845 = vweird.f32 %v839
        %vm846 = vmor %vm844, %vm845
        %v847 = vsel %vm846, %v839, %v843
        %v848 = vand.u32 2147483647, %v807
        %vm849 = vcmp.eq.f32.partialorder %v848, 8.507059e+37
        %v850 = vand.u32 %v807, 2147483648
        %v851 = vor.u32 1.1754944e-38, %v850
        %v852 = vsel %vm849, %v851, %v847
        %v853 = vmul.f32 1.0, %v852
        %v854 = vrcp.pop %v808
        %v855 = vmul.f32 %v808, %v854
        %v856 = vsub.f32 1.0, %v855
        %v857 = vmul.f32 %v854, %v856
        %v858 = vadd.f32 %v854, %v857
        %vm859 = vweird.f32 %v808
        %vm860 = vweird.f32 %v854
        %vm861 = vmor %vm859, %vm860
        %v862 = vsel %vm861, %v854, %v858
        %v863 = vand.u32 2147483647, %v808
        %vm864 = vcmp.eq.f32.partialorder %v863, 8.507059e+37
        %v865 = vand.u32 %v808, 2147483648
        %v866 = vor.u32 1.1754944e-38, %v865
        %v867 = vsel %vm864, %v866, %v862
        %v868 = vmul.f32 1.0, %v867
        %v869 = vmul.f32 %v697, %v823
        %v870 = vmul.f32 %v699, %v838
        %v871 = vmul.f32 %v702, %v853
        %v872 = vmul.f32 %v704, %v868
        %s873 = smul.u32 %s38, 16
        %s874 = ssub.s32 %s873, 8
        %v875 = vlaneseq
        %v876 = vshrl.u32 %v875, 7
        %v877 = vadd.s32 %v876, 8
        %v878 = vadd.s32 %v876, 16
        %v879 = vadd.s32 %v876, 24
        %v880 = vstv %s874
        %v881 = vadd.s32 %v880, %v876
        %v882 = vadd.s32 %v880, %v877
        %v883 = vadd.s32 %v880, %v878
        %v884 = vadd.s32 %v880, %v879
        %vm885 = vcmp.ge.s32.totalorder %v881, 0
        %vm886 = vcmp.ge.s32.totalorder %v882, 0
        %vm887 = vcmp.ge.s32.totalorder %v883, 0
        %vm888 = vcmp.ge.s32.totalorder %v884, 0
        %vm889 = vcmp.lt.s32.totalorder %v881, 16
        %vm890 = vcmp.lt.s32.totalorder %v882, 16
        %vm891 = vcmp.lt.s32.totalorder %v883, 16
        %vm892 = vcmp.lt.s32.totalorder %v884, 16
        %vm893 = vmand %vm885, %vm889
        %vm894 = vmand %vm886, %vm890
        %vm895 = vmand %vm887, %vm891
        %vm896 = vmand %vm888, %vm892
        %v897 = vsel %vm893, 1, 0
        %v898 = vsel %vm894, 1, 0
        %v899 = vsel %vm895, 1, 0
        %v900 = vsel %vm896, 1, 0
        %vm901 = vcmp.eq.s32.totalorder %v897, 1
        %vm902 = vcmp.eq.s32.totalorder %v898, 1
        %vm903 = vcmp.eq.s32.totalorder %v899, 1
        %vm904 = vcmp.eq.s32.totalorder %v900, 1
        %v905 = vsel %vm901, %v869, 0.0
        %v906 = vsel %vm902, %v870, 0.0
        %v907 = vsel %vm903, %v871, 0.0
        %v908 = vsel %vm904, %v872, 0.0
        %v909 = vld [vmem:[%s7] sm:$0x7]
        %v910 = vperm.slane %v909, 0
        %v911 = vmul.f32 %v905, %v910
        %v912 = vmul.f32 %v906, %v910
        %v913 = vmul.f32 %v907, %v910
        %v914 = vadd.f32 %v911, 0.0
        %v915 = vadd.f32 %v912, 0.0
        %v916 = vadd.f32 %v913, 0.0
        %v917 = vperm.slane %v909, 1
        %v918 = vmul.f32 %v906, %v917
        %v919 = vmul.f32 %v907, %v917
        %vm922 = vcmask 1046528
        %v923 = vrot.slane %v918, 1
        %v924 = vrot.slane %v919, 1
        %v925 = vsel %vm922, %v923, %v924
        %v929 = vadd.f32 %v914, %v923
        %v930 = vadd.f32 %v915, %v925
        %v931 = vadd.f32 %v916, %v924
        %v932 = vperm.slane %v909, 2
        %v933 = vmul.f32 %v906, %v932
        %v934 = vmul.f32 %v907, %v932
        %v935 = vmul.f32 %v908, %v932
        %vm939 = vcmask 1045504
        %v940 = vrot.slane %v933, 2
        %v941 = vrot.slane %v934, 2
        %v942 = vsel %vm939, %v940, %v941
        %v943 = vrot.slane %v935, 2
        %v944 = vsel %vm939, %v941, %v943
        %v948 = vadd.f32 %v929, %v940
        %v949 = vadd.f32 %v930, %v942
        %v950 = vadd.f32 %v931, %v944
        %v951 = vld [vmem:[%s8] sm:$0x1]
        %v953 = vperm.slane %v951, 0
        %v955 = vadd.f32 %v948, %v953
        %v956 = vadd.f32 %v949, %v953
        %v957 = vadd.f32 %v950, %v953
        %v958 = vpack.c.bf16 %v956, %v955
        %v959 = vpack.c.bf16 %v957, %v957
        %v960 = vld [vmem:[#allocation12] sm:$0xf]
        %v961 = vld [vmem:[#allocation12 + $0x4] sm:$0xf]
        %v962 = vld [vmem:[#allocation12 + $0x8] sm:$0xf]
        %v963 = vld [vmem:[#allocation12 + $0xc] sm:$0xf]
        %v964 = vld [vmem:[#allocation12 + $0x10] sm:$0xf]
        %v965 = vld [vmem:[#allocation12 + $0x14] sm:$0xf]
        %v966 = vld [vmem:[#allocation12 + $0x18] sm:$0xf]
        %v967 = vld [vmem:[#allocation12 + $0x1c] sm:$0xf]
        %v968 = vld [vmem:[#allocation12 + $0x20] sm:$0xf]
        %v969 = vld [vmem:[#allocation12 + $0x24] sm:$0xf]
        %v970 = vld [vmem:[#allocation12 + $0x28] sm:$0xf]
        %v971 = vld [vmem:[#allocation12 + $0x2c] sm:$0xf]
        %v972 = vld [vmem:[#allocation12 + $0x30] sm:$0xf]
        %v973 = vld [vmem:[#allocation12 + $0x34] sm:$0xf]
        %v974 = vld [vmem:[#allocation12 + $0x38] sm:$0xf]
        %v975 = vld [vmem:[#allocation12 + $0x3c] sm:$0xf]
        %v976 = vld [vmem:[%s10] sm:$0x1]
        %v978 = vperm.slane %v976, 0
        %vm980 = vsmask.f32 4352
        %v982 = vshrl.u32 %v958, 16
        %v984 = vrot.slane %v982, 3
        %v985 = vshll.u32 %v958, 16
        %v987 = vrot.slane %v985, 4
        %v988 = vor.u32 %v984, %v987
        %v990 = vshrl.u32 %v959, 16
        %v992 = vrot.slane %v990, 3
        %v993 = vshll.u32 %v959, 16
        %v995 = vrot.slane %v993, 4
        %v996 = vor.u32 %v992, %v995
        %v997 = vsel %vm980, %v988, %v996
        %v1015 = vunpack.c.l.b16 %v960
        %v1016 = vunpack.c.l.b16 %v961
        %v1017 = vunpack.c.l.b16 %v962
        %v1018 = vunpack.c.l.b16 %v963
        %v1019 = vunpack.c.l.b16 %v964
        %v1020 = vunpack.c.l.b16 %v965
        %v1021 = vunpack.c.l.b16 %v966
        %v1022 = vunpack.c.l.b16 %v967
        %v1023 = vunpack.c.l.b16 %v968
        %v1024 = vunpack.c.l.b16 %v969
        %v1025 = vunpack.c.l.b16 %v970
        %v1026 = vunpack.c.l.b16 %v971
        %v1027 = vunpack.c.l.b16 %v972
        %v1028 = vunpack.c.l.b16 %v973
        %v1029 = vunpack.c.l.b16 %v974
        %v1030 = vunpack.c.l.b16 %v975
        %v1031 = vpack.c.b16 %v1016, %v1015
        %v1032 = vpack.c.b16 %v1018, %v1017
        %v1033 = vpack.c.b16 %v1020, %v1019
        %v1034 = vpack.c.b16 %v1022, %v1021
        %v1035 = vpack.c.b16 %v1024, %v1023
        %v1036 = vpack.c.b16 %v1026, %v1025
        %v1037 = vpack.c.b16 %v1028, %v1027
        %v1038 = vpack.c.b16 %v1030, %v1029
        %1047 = vmatpush.bf16.msra.mxu0 %v1038
        %1048 = vmatpush.bf16.msra.mxu0 %v1037
        %1049 = vmatpush.bf16.msra.mxu0 %v1036
        %1050 = vmatpush.bf16.msra.mxu0 %v1035
        %1051 = vmatpush.bf16.msra.mxu0 %v1034
        %1052 = vmatpush.bf16.msra.mxu0 %v1033
        %1053 = vmatpush.bf16.msra.mxu0 %v1032
        %1054 = vmatpush.bf16.msra.mxu0 %v1031
        %1055 = vmatmul.bf16.gmra.mxu0 %v997
        %v1056 = vpop.f32.mrf.mxu0
        %v1057 = vadd.f32 %v978, %v1056
        %v1058 = vpop.f32.mrf.mxu0
        %v1059 = vadd.f32 %v978, %v1058
        %1060 = vdwg.mxu0
        %1061 = vst [vmem:[%s582] sm:$0xff] %v1057
        %1062 = vst [vmem:[%s582 + $0x8] sm:$0xff] %v1059
        %s1063 = sand.u32 %s319, 1
        %s1064 = scalar_lea.sflag [#allocation5], %s1063
        %s1065 = sand.u32 %s319, 1
        %s1066 = smul.addr %s1065, 16
        %s1067 = scalar_lea.vmem [#allocation14], %s1066
        // Predicated region
        $region89: #{tpu_custom_call.1} parent=63 // pred_check
          %p1068 = pneg %p329
        $region90: #{tpu_custom_call.1} parent=63 // pred_check_branch
          %1070 = sbr.rel (%p1068) target = $region92
        $region91: #{tpu_custom_call.1} parent=63 // pred_region
          %s1071 = smul.u32 2, %s38
          %1073 = vsyncadd %s1064, 0
          %s1074 = smul.addr %s37, 2
          %s1075 = sadd.s32 %s1071, %s1074
          %s1076 = smul.addr %s1075, 8
          %s1077 = scalar_lea.hbm %s11, %s1076
          %s1078 = sshll.u32 %s1067, 4
          %s1079 = int_to_ptr.vmem [resolvable:$true] %s1078
          %s1080 = sshll.u32 %s1077, 4
          %s1081 = int_to_ptr.hbm [resolvable:$true] %s1080
          %1086 = dma.vmem_to_hbm [thread:$0]  %s1079, 256, %s1081, %s1064, 128, 128, 8
        $region92: #{tpu_custom_call.1} parent=63 // pred_fallthru
          _
      $region64: #{tpu_custom_call.1} parent=5 // pred_fallthru
        _
      %p1087 = scmp.le.s32.totalorder 2, %s28
      // Predicated region
      $region93: #{tpu_custom_call.1} parent=5 // pred_check
        %p1088 = pneg %p1087
      $region94: #{tpu_custom_call.1} parent=5 // pred_check_branch
        %1090 = sbr.rel (%p1088) target = $region96
      $region95: #{tpu_custom_call.1} parent=5 // pred_region
        %s1091 = ssub.s32 %s28, 2
        // Predicated region
        $region97: #{tpu_custom_call.1} parent=95 // pred_check
          %p1092 = pneg %p335
        $region98: #{tpu_custom_call.1} parent=95 // pred_check_branch
          %1094 = sbr.rel (%p1092) target = $region100
        $region99: #{tpu_custom_call.1} parent=95 // pred_region
          %s1095 = sand.u32 %s320, 1
          %s1096 = scalar_lea.sflag [#allocation5], %s1095
          %s1097 = sand.u32 %s320, 1
          %s1098 = smul.addr %s1097, 16
          %s1099 = scalar_lea.vmem [#allocation14], %s1098
          %1101 = dma.done %s1096, 256
        $region100: #{tpu_custom_call.1} parent=95 // pred_fallthru
          _
      $region96: #{tpu_custom_call.1} parent=5 // pred_fallthru
        _
    $region6: #{tpu_custom_call.1} parent=1 // loop_footer
      %s32 = sadd.s32 1, %s28
    $region7: #{tpu_custom_call.1} parent=1 // loop_footer_branch
      %27 = sbr.rel target = $region3
    $region8: #{tpu_custom_call.1} parent=1 // loop_exit
      _
    %1102 = vsyncpa [#allocation4], 1
    %s1103 = scalar_lea.sflag [#allocation4], 1
    %1104 = vsyncpa %s1103, 1
    %1105 = vsyncpa [#allocation7], 1
    %s1106 = scalar_lea.sflag [#allocation7], 1
    %1107 = vsyncpa %s1106, 1
    %1108 = vsyncpa [#allocation10], 1
    %1109 = vsyncpa [#allocation13], 1
    %1110 = vsyncpa [#allocation5], 1
    %s1111 = scalar_lea.sflag [#allocation5], 1
    %1112 = vsyncpa %s1111, 1

</llo_original>
